<compile_context>
chip_gen: v7x
topology: tpu7x:2x2x1
jax: 0.10.0
libtpu: 0.0.40
codegen_flags: <defaults>
</compile_context>

<pallas_src>
import math

import jax
import jax.numpy as jnp
from jax.experimental import pallas as pl
from jax.experimental.pallas import tpu as pltpu


# ------------------------------ kernels ------------------------------

def _one_hot_packed_kernel(sel_ref, cls_ref, idx_ref, out_ref):
    """Lane-dense packed one-hot.

    sel_ref : (g, L)   spread selector, sel[j, c] = 1 iff c // n == j  (bf16/f32)
    cls_ref : (1, L)   f32 class id per lane, cls[c] = c % n
    idx_ref : (tb, g)  int8/int16 indices, g samples per L-lane output row
    out_ref : (tb, L)  f32, L = g * n (multiple of 128 -> unmasked full vst)

    sel/cls use a constant index_map so they stay VMEM-resident across the
    grid (loop-invariant constants hoisted out of the per-step body).
    """
    lhs = idx_ref[...].astype(jnp.int32).astype(sel_ref.dtype)
    # Spread each packed index across its n output lanes with a small MXU
    # matmul (K = g); bf16 operands when n <= 256 (values exact) -> one pass.
    # TODO(synk): on v7x, confirm via bundle dump that the MXU spread stays
    # under the DMA writeback window; otherwise switch to an XLU lane-repeat.
    idx_b = jnp.dot(lhs, sel_ref[...], preferred_element_type=jnp.float32)
    out_ref[...] = (idx_b == cls_ref[...]).astype(jnp.float32)


def _one_hot_rowwise_kernel(cls_ref, idx_ref, out_ref):
    """Fallback: one index per output row (n a multiple of 128, or lcm too big).

    cls_ref : (1, n)   int32 column ids (hoisted constant, VMEM-resident)
    idx_ref : (tb, 1)  int8/int16/int32 indices
    out_ref : (tb, n)  f32
    """
    out_ref[...] = (idx_ref[...].astype(jnp.int32) == cls_ref[...]
                    ).astype(jnp.float32)


# ------------------------------ helpers ------------------------------

_OUT_TILE_BYTES = 6 * 1024 * 1024   # in the 4-8 MiB (v5e/v6e) ∩ 4-6 MiB (v7x) window


def _idx_dtype(n):
    """(narrow index dtype, sublane alignment of its packed vreg tiling)."""
    if n <= 128:
        return jnp.int8, 32
    if n <= 32768:
        return jnp.int16, 16
    return jnp.int32, 8


def _pick_tile_rows(rows, out_lanes, align):
    """Rows per grid step: ~6 MiB f32 output tile; >= 2 grid steps whenever
    possible (so ("parallel",) shards across v7x's 2 TCs); tiny inputs get a
    single full-extent block (always legal)."""
    tb = max(1, _OUT_TILE_BYTES // (out_lanes * 4))
    tb = min(tb, pl.cdiv(rows, 2))          # prefer >= 2 steps for megacore
    tb = (tb // align) * align              # sublane / packed-dtype alignment
    if tb < align:
        tb = align
    if tb >= rows:
        return rows
    return tb


def _vmem_limit_bytes(tb, out_lanes, idx_itemsize, const_bytes):
    """Double-buffered output tile + lane-padded (to 128) index tile + resident
    constants + headroom.  Capped at 32 MiB: <= scoped default on v6e/v7x and
    half of v7x's 64 MiB physical VMEM."""
    need = 2 * (tb * out_lanes * 4 + tb * 128 * idx_itemsize) + 2 * const_bytes
    need += 2 << 20
    return int(min(max(need, 16 << 20), 32 << 20))


def _one_hot_pallas(X, n):
    lead = X.shape
    B = math.prod(lead)
    if B == 0:
        return jnp.zeros(lead + (n,), jnp.float32)

    idx_dtype, align = _idx_dtype(n)
    # Clip before the narrow cast so out-of-range values can't wrap into
    # [0, n); -1 / n never match any class -> all-zero row (jax.nn.one_hot).
    idx = jnp.clip(X.reshape(B), -1, n).astype(idx_dtype)

    L = math.lcm(n, 128)
    if L <= 2048 and L > n:
        # ---- packed lane-dense path: g = L // n indices per (., L) row ----
        g = L // n
        rows = pl.cdiv(B, g)
        Bp = rows * g
        if Bp != B:
            # TODO(synk): handle the ragged tail in-kernel (masked last-block
            # store) so the post-kernel [:B] slice can't materialize an extra
            # HBM round trip when it doesn't fuse into the consumer.
            idx = jnp.pad(idx, (0, Bp - B))
        idx2d = idx.reshape(rows, g)

        spread_dtype = jnp.bfloat16 if n <= 256 else jnp.float32
        lane = jnp.arange(L, dtype=jnp.int32)
        cls = (lane % n).astype(jnp.float32).reshape(1, L)
        sel = (lane[None, :] // n ==
               jnp.arange(g, dtype=jnp.int32)[:, None]).astype(spread_dtype)

        tb = _pick_tile_rows(rows, L, align)
        const_bytes = sel.size * sel.dtype.itemsize + cls.size * 4
        out = pl.pallas_call(
            _one_hot_packed_kernel,
            out_shape=jax.ShapeDtypeStruct((rows, L), jnp.float32),
            grid=(pl.cdiv(rows, tb),),
            in_specs=[
                pl.BlockSpec((g, L), lambda i: (0, 0)),   # resident constant
                pl.BlockSpec((1, L), lambda i: (0, 0)),   # resident constant
                pl.BlockSpec((tb, g), lambda i: (i, 0)),
            ],
            out_specs=pl.BlockSpec((tb, L), lambda i: (i, 0)),
            compiler_params=pltpu.CompilerParams(
                dimension_semantics=("parallel",),
                vmem_limit_bytes=_vmem_limit_bytes(
                    tb, L, idx.dtype.itemsize, const_bytes),
            ),
        )(sel, cls, idx2d)
        # (rows, L) row-major is bit-identical to (Bp, n) row-major.
        out = out.reshape(Bp, n)
        if Bp != B:
            out = out[:B]
    else:
        # ---- row-wise path (n is a multiple of 128, or lcm(n,128) > 2048,
        #      in which case the last dim is already reasonably lane-dense) ----
        idx2d = idx.reshape(B, 1)
        cls = jnp.arange(n, dtype=jnp.int32).reshape(1, n)
        tb = _pick_tile_rows(B, n, align)
        out = pl.pallas_call(
            _one_hot_rowwise_kernel,
            out_shape=jax.ShapeDtypeStruct((B, n), jnp.float32),
            grid=(pl.cdiv(B, tb),),
            in_specs=[
                pl.BlockSpec((1, n), lambda i: (0, 0)),   # resident constant
                pl.BlockSpec((tb, 1), lambda i: (i, 0)),
            ],
            out_specs=pl.BlockSpec((tb, n), lambda i: (i, 0)),
            compiler_params=pltpu.CompilerParams(
                dimension_semantics=("parallel",),
                vmem_limit_bytes=_vmem_limit_bytes(
                    tb, n, idx.dtype.itemsize, n * 4),
            ),
        )(cls, idx2d)

    return out.reshape(lead + (n,))


# ------------------------------ wrapper ------------------------------

class DiscreteInputModule:
    """JAX/Pallas port of the PyTorch DiscreteInputModule (live forward path).

    live path:
      X.shape[-1] == n  ->  X.astype(float32)                (passthrough cast)
      otherwise         ->  one_hot(X, n).astype(float32)
    """

    def __init__(self, n: int):
        self.n = int(n)
        # NOTE: the PyTorch module registers an `eye` buffer that is dead on
        # the live code path; it is intentionally not materialized here.

    def __call__(self, X):
        X = jnp.asarray(X)
        n = self.n
        if X.ndim > 0 and X.shape[-1] == n:
            # Plain fused XLA cast: already at HBM roofline — a pallas_call
            # would only add launch overhead and an extra fusion boundary.
            return X.astype(jnp.float32)
        return _one_hot_pallas(X, n)


# ------------------------------ main ------------------------------

if __name__ == "__main__":
    key = jax.random.PRNGKey(0)
    k1, k2, k3, k4, k5 = jax.random.split(key, 5)

    # Case 1: n=16 -> packed path (g=8, L=128), multi-step parallel grid.
    m16 = DiscreteInputModule(16)
    idx1 = jax.random.randint(k1, (512,), 0, 16, dtype=jnp.int32)
    out1 = jax.block_until_ready(m16(idx1))
    assert out1.shape == (512, 16) and out1.dtype == jnp.float32
    assert jnp.array_equal(out1, jax.nn.one_hot(idx1, 16, dtype=jnp.float32))

    # Case 2: leading batch dims, B=10 not a multiple of g=8 (ragged tail).
    idx2 = jax.random.randint(k2, (2, 5), 0, 16, dtype=jnp.int32)
    out2 = jax.block_until_ready(m16(idx2))
    assert out2.shape == (2, 5, 16) and out2.dtype == jnp.float32
    assert jnp.array_equal(out2, jax.nn.one_hot(idx2, 16, dtype=jnp.float32))

    # Case 3: already one-hot-shaped input -> passthrough cast to float32.
    x3 = (jax.random.uniform(k3, (2, 4, 16)) > 0.5).astype(jnp.int32)
    out3 = jax.block_until_ready(m16(x3))
    assert out3.shape == (2, 4, 16) and out3.dtype == jnp.float32
    assert jnp.array_equal(out3, x3.astype(jnp.float32))

    # Case 4: n=10 (128 % n != 0) -> extended packed path, L=lcm(10,128)=640.
    m10 = DiscreteInputModule(10)
    idx4 = jax.random.randint(k4, (4, 8), 0, 10, dtype=jnp.int32)
    out4 = jax.block_until_ready(m10(idx4))
    assert out4.shape == (4, 8, 10) and out4.dtype == jnp.float32
    assert jnp.array_equal(out4, jax.nn.one_hot(idx4, 10, dtype=jnp.float32))

    # Case 5: n=200 (lcm(200,128)=3200 > 2048) -> row-wise fallback path.
    m200 = DiscreteInputModule(200)
    idx5 = jax.random.randint(k5, (8,), 0, 200, dtype=jnp.int32)
    out5 = jax.block_until_ready(m200(idx5))
    assert out5.shape == (8, 200) and out5.dtype == jnp.float32
    assert jnp.array_equal(out5, jax.nn.one_hot(idx5, 200, dtype=jnp.float32))

    print("KERNEL_OK")
</pallas_src>

<mosaic_0001>
module attributes {stable_mosaic.version = 11 : i64} {
  func.func @_one_hot_packed_kernel(%arg0: i32, %arg1: memref<8x128xbf16, #tpu.memory_space<vmem>>, %arg2: memref<1x128xf32, #tpu.memory_space<vmem>>, %arg3: memref<32x8xi8, #tpu.memory_space<vmem>>, %arg4: memref<32x128xf32, #tpu.memory_space<vmem>>) attributes {dimension_semantics = [#tpu.dimension_semantics<parallel>], iteration_bounds = array<i64: 2>, scalar_prefetch = 0 : i64, scratch_operands = 0 : i64, tpu.core_type = #tpu.core_type<tc>, window_params = [{pipeline_mode = #tpu.pipeline_mode<synchronous>, transform_indices = @transform_0, window_bounds = array<i64: 8, 128>}, {pipeline_mode = #tpu.pipeline_mode<synchronous>, transform_indices = @transform_1, window_bounds = array<i64: 1, 128>}, {transform_indices = @transform_2, window_bounds = array<i64: 32, 8>}, {transform_indices = @transform_3, window_bounds = array<i64: 32, 128>}]} {
    %c0 = arith.constant 0 : index
    %c0_0 = arith.constant 0 : index
    %0 = vector.load %arg3[%c0, %c0_0] : memref<32x8xi8, #tpu.memory_space<vmem>>, vector<32x8xi8>
    %1 = arith.extsi %0 : vector<32x8xi8> to vector<32x8xi32>
    %2 = arith.sitofp %1 : vector<32x8xi32> to vector<32x8xbf16>
    %c0_1 = arith.constant 0 : index
    %c0_2 = arith.constant 0 : index
    %3 = vector.load %arg1[%c0_1, %c0_2] : memref<8x128xbf16, #tpu.memory_space<vmem>>, vector<8x128xbf16>
    %cst = arith.constant dense<0.000000e+00> : vector<32x128xf32>
    %4 = tpu.matmul %2, %3, %cst {dimension_numbers = #tpu.dot_dimension_numbers<[1], [0], [0], [1], [0, 0, 1, 1], [], []>} : vector<32x8xbf16>, vector<8x128xbf16>, vector<32x128xf32> -> vector<32x128xf32>
    %c0_3 = arith.constant 0 : index
    %c0_4 = arith.constant 0 : index
    %5 = vector.load %arg2[%c0_3, %c0_4] : memref<1x128xf32, #tpu.memory_space<vmem>>, vector<1x128xf32>
    %6 = vector.broadcast %5 : vector<1x128xf32> to vector<32x128xf32>
    %7 = arith.cmpf oeq, %4, %6 : vector<32x128xf32>
    %8 = arith.extui %7 : vector<32x128xi1> to vector<32x128xi32>
    %9 = arith.sitofp %8 : vector<32x128xi32> to vector<32x128xf32>
    %c0_5 = arith.constant 0 : index
    %c0_6 = arith.constant 0 : index
    %10 = vector.load %arg4[%c0_5, %c0_6] : memref<32x128xf32, #tpu.memory_space<vmem>>, vector<32x128xf32>
    tpu.vector_store %arg4[%c0_5, %c0_6], %9 {strides = array<i32>} : memref<32x128xf32, #tpu.memory_space<vmem>>, vector<32x128xf32>,
    return
  }
  func.func @transform_0(%arg0: i32) -> (i32, i32) {
    %c0_i32 = arith.constant 0 : i32
    %c0_i32_0 = arith.constant 0 : i32
    %c0_i32_1 = arith.constant 0 : i32
    return %c0_i32, %c0_i32_0 : i32, i32
  }
  func.func @transform_1(%arg0: i32) -> (i32, i32) {
    %c0_i32 = arith.constant 0 : i32
    %c0_i32_0 = arith.constant 0 : i32
    %c0_i32_1 = arith.constant 0 : i32
    return %c0_i32, %c0_i32_0 : i32, i32
  }
  func.func @transform_2(%arg0: i32) -> (i32, i32) {
    %c0_i32 = arith.constant 0 : i32
    %c0_i32_0 = arith.constant 0 : i32
    return %arg0, %c0_i32 : i32, i32
  }
  func.func @transform_3(%arg0: i32) -> (i32, i32) {
    %c0_i32 = arith.constant 0 : i32
    %c0_i32_0 = arith.constant 0 : i32
    return %arg0, %c0_i32 : i32, i32
  }
}

</mosaic_0001>

<llo_original>
// kernel: tpu_custom_call.1
$region0: #{tpu_custom_call.1}
  #allocation0 [shape = 'u32[]', space=smem, size = 0x4, offset = 0x4, fixed_abs, tag = 'smem constant byte address 0x4 - core index']
  #allocation1 [shape = 'u32[144,128]{1,0:T(1,128)}', space=vmem, size = 0x12000, scoped, tag = 'internal scratch']
  %s0 = inlined_call_operand.vmem [shape: bf16[8,128], index: 0, kind: input, shape index: {}]
  %s1 = inlined_call_operand.vmem [shape: f32[1,128], index: 1, kind: input, shape index: {}]
  %s2 = inlined_call_operand.vmem [shape: s8[64,8], index: 2, kind: input, shape index: {}]
  %s3 = inlined_call_operand.hbm [shape: f32[64,128], index: 3, kind: output, shape index: {}]
  %s4 = sld [smem:[#allocation0]]
  $region45: #{tpu_custom_call.1} parent=0
    _
  %s6 = ssub.s32 1, %s4
  %s7 = scalar_select 0, %s6, %s4
  $region1: #{tpu_custom_call.1} parent=0
    #allocation2 [shape = 'u8[32768]{0}', space=vmem, size = 0x8000, scoped, tag = 'output window, operand 0']
    #allocation3 [shape = 's32[2]{0}', space=sflag, size = 0x8, scoped, tag = 'scoped memory for tpu_custom_call.1']
    %8 = vsyncpa [#allocation3], 0
    %s9 = scalar_lea.sflag [#allocation3], 1
    %10 = vsyncpa %s9, 0
    loop: start=0, step=1, limit=4
    $region2: #{tpu_custom_call.1} parent=1 // loop_pre_header
      _
    $region3: #{tpu_custom_call.1} parent=1 // loop_header
      %s12 = sphi 0, %s16
      %p13 = scmp.ge.s32.totalorder %s12, 4
      %s20 = sphi 0, %s20
      %s22 = sphi 0, %s20
      %s23 = sphi 0, %s22
      %s37 = sphi 0, %s23
      %s41 = sphi 0, %s41
      %s43 = sphi 0, %s41
      %s44 = sphi 0, %s43
      %s58 = sphi 0, %s44
      %s64 = sphi 0, %s66
      %s67 = sphi 0, %s64
      %s68 = sphi 0, %s67
      %s84 = sphi 0, %s68
      %s90 = sphi 0, %s92
      %s93 = sphi 0, %s90
      %s94 = sphi 0, %s93
      %s110 = sphi 0, %s94
    $region4: #{tpu_custom_call.1} parent=1 // loop_header_branch
      %15 = sbr.rel (%p13) target = $region8
    $region5: #{tpu_custom_call.1} parent=1 // loop_body
      %s17 = ssub.s32 %s12, 1
      %s18 = ssub.s32 %s12, 2
      %s19 = sadd.s32 %s12, 1
      %s21 = sadd.s32 %s20, 1
      %p24 = scmp.eq.s32.totalorder %s12, 1
      %p25 = scmp.ne.s32.totalorder %s20, %s22
      %p26 = scmp.eq.s32.totalorder %s12, 0
      %p27 = por %p25, %p26
      %p28 = scmp.ne.s32.totalorder %s20, %s22
      %p29 = scmp.eq.s32.totalorder %s17, 1
      %p30 = por %p28, %p29
      %p31 = scmp.ne.s32.totalorder %s22, %s23
      %p32 = scmp.eq.s32.totalorder %s17, 0
      %p33 = por %p31, %p32
      %p34 = scmp.ne.s32.totalorder %s22, %s23
      %p35 = scmp.eq.s32.totalorder %s18, 1
      %p36 = por %p34, %p35
      %p38 = scmp.ne.s32.totalorder %s23, %s37
      %p39 = scmp.eq.s32.totalorder %s18, 0
      %p40 = por %p38, %p39
      %s42 = sadd.s32 %s41, 1
      %p45 = scmp.eq.s32.totalorder %s12, 1
      %p46 = scmp.ne.s32.totalorder %s41, %s43
      %p47 = scmp.eq.s32.totalorder %s12, 0
      %p48 = por %p46, %p47
      %p49 = scmp.ne.s32.totalorder %s41, %s43
      %p50 = scmp.eq.s32.totalorder %s17, 1
      %p51 = por %p49, %p50
      %p52 = scmp.ne.s32.totalorder %s43, %s44
      %p53 = scmp.eq.s32.totalorder %s17, 0
      %p54 = por %p52, %p53
      %p55 = scmp.ne.s32.totalorder %s43, %s44
      %p56 = scmp.eq.s32.totalorder %s18, 1
      %p57 = por %p55, %p56
      %p59 = scmp.ne.s32.totalorder %s44, %s58
      %p60 = scmp.eq.s32.totalorder %s18, 0
      %p61 = por %p59, %p60
      %s62 = ssub.s32 %s12, %s19
      %p63 = scmp.eq.s32.totalorder %s62, 0
      %s65 = sadd.s32 %s64, 1
      %s66 = scalar_select %p63, %s64, %s65
      %p69 = pneg %p63
      %p70 = scmp.eq.s32.totalorder %s12, 1
      %p71 = por %p69, %p70
      %p72 = scmp.ne.s32.totalorder %s64, %s67
      %p73 = scmp.eq.s32.totalorder %s12, 0
      %p74 = por %p72, %p73
      %p75 = scmp.ne.s32.totalorder %s64, %s67
      %p76 = scmp.eq.s32.totalorder %s17, 1
      %p77 = por %p75, %p76
      %p78 = scmp.ne.s32.totalorder %s67, %s68
      %p79 = scmp.eq.s32.totalorder %s17, 0
      %p80 = por %p78, %p79
      %p81 = scmp.ne.s32.totalorder %s67, %s68
      %p82 = scmp.eq.s32.totalorder %s18, 1
      %p83 = por %p81, %p82
      %p85 = scmp.ne.s32.totalorder %s68, %s84
      %p86 = scmp.eq.s32.totalorder %s18, 0
      %p87 = por %p85, %p86
      %s88 = ssub.s32 %s12, %s19
      %p89 = scmp.eq.s32.totalorder %s88, 0
      %s91 = sadd.s32 %s90, 1
      %s92 = scalar_select %p89, %s90, %s91
      %p95 = pneg %p89
      %p96 = scmp.eq.s32.totalorder %s12, 1
      %p97 = por %p95, %p96
      %p98 = scmp.ne.s32.totalorder %s90, %s93
      %p99 = scmp.eq.s32.totalorder %s12, 0
      %p100 = por %p98, %p99
      %p101 = scmp.ne.s32.totalorder %s90, %s93
      %p102 = scmp.eq.s32.totalorder %s17, 1
      %p103 = por %p101, %p102
      %p104 = scmp.ne.s32.totalorder %s93, %s94
      %p105 = scmp.eq.s32.totalorder %s17, 0
      %p106 = por %p104, %p105
      %p107 = scmp.ne.s32.totalorder %s93, %s94
      %p108 = scmp.eq.s32.totalorder %s18, 1
      %p109 = por %p107, %p108
      %p111 = scmp.ne.s32.totalorder %s94, %s110
      %p112 = scmp.eq.s32.totalorder %s18, 0
      %p113 = por %p111, %p112
      %p114 = scmp.le.s32.totalorder 1, %s12
      %p115 = scmp.lt.s32.totalorder %s12, 3
      %p116 = pnand %p114, %p115
      %p117 = pneg %p116
      // Predicated region
      $region9: #{tpu_custom_call.1} parent=5 // pred_check
        _
      $region10: #{tpu_custom_call.1} parent=5 // pred_check_branch
        %119 = sbr.rel (%p116) target = $region12
      $region11: #{tpu_custom_call.1} parent=5 // pred_region
        %s120 = ssub.s32 %s12, 1
        // Predicated region
        $region13: #{tpu_custom_call.1} parent=11 // pred_check
          %p121 = pneg %p33
        $region14: #{tpu_custom_call.1} parent=11 // pred_check_branch
          %123 = sbr.rel (%p121) target = $region16
        $region15: #{tpu_custom_call.1} parent=11 // pred_region
          _
        $region16: #{tpu_custom_call.1} parent=11 // pred_fallthru
          _
        // Predicated region
        $region17: #{tpu_custom_call.1} parent=11 // pred_check
          %p124 = pneg %p54
        $region18: #{tpu_custom_call.1} parent=11 // pred_check_branch
          %126 = sbr.rel (%p124) target = $region20
        $region19: #{tpu_custom_call.1} parent=11 // pred_region
          _
        $region20: #{tpu_custom_call.1} parent=11 // pred_fallthru
          _
      $region12: #{tpu_custom_call.1} parent=5 // pred_fallthru
        _
      %p127 = scmp.lt.s32.totalorder %s12, 2
      // Predicated region
      $region21: #{tpu_custom_call.1} parent=5 // pred_check
        %p128 = pneg %p127
      $region22: #{tpu_custom_call.1} parent=5 // pred_check_branch
        %130 = sbr.rel (%p128) target = $region24
      $region23: #{tpu_custom_call.1} parent=5 // pred_region
        // Predicated region
        $region25: #{tpu_custom_call.1} parent=23 // pred_check
          %p131 = pneg %p74
        $region26: #{tpu_custom_call.1} parent=23 // pred_check_branch
          %133 = sbr.rel (%p131) target = $region28
        $region27: #{tpu_custom_call.1} parent=23 // pred_region
          %s134 = smul.u32 4, %s12
          %p135 = scmp.lt.s32.totalorder %s134, 7
          %s136 = scalar_select %p135, %s134, 7
          %s137 = smul.addr %s136, 2
          %s138 = scalar_lea.vmem %s2, %s137
          %s139 = smul.u32 4, %s12
        $region28: #{tpu_custom_call.1} parent=23 // pred_fallthru
          _
      $region24: #{tpu_custom_call.1} parent=5 // pred_fallthru
        _
      %p140 = scmp.le.s32.totalorder 1, %s12
      %p141 = scmp.lt.s32.totalorder %s12, 3
      %p142 = pnand %p140, %p141
      %p143 = pneg %p142
      // Predicated region
      $region29: #{tpu_custom_call.1} parent=5 // pred_check
        _
      $region30: #{tpu_custom_call.1} parent=5 // pred_check_branch
        %145 = sbr.rel (%p142) target = $region32
      $region31: #{tpu_custom_call.1} parent=5 // pred_region
        %s146 = ssub.s32 %s12, 1
        %p147 = pneg %p33
        %p148 = pneg %p30
        %p149 = pneg %p54
        %p150 = pneg %p51
        %s151 = smul.u32 4, %s17
        %p152 = scmp.lt.s32.totalorder %s151, 7
        %s153 = scalar_select %p152, %s151, 7
        %s154 = smul.addr %s153, 2
        %s155 = scalar_lea.vmem %s2, %s154
        %p156 = pneg %p80
        %p157 = pneg %p77
        %p158 = pneg %p106
        %p159 = pneg %p103
        %s160 = sand.u32 %s93, 1
        %s161 = scalar_lea.sflag [#allocation3], %s160
        %s162 = sand.u32 %s93, 1
        %s163 = smul.addr %s162, 32
        %s164 = scalar_lea.vmem [#allocation2], %s163
        %s165 = smul.u32 4, %s17
        %p166 = scmp.lt.s32.totalorder %s165, 7
        %s167 = scalar_select %p166, %s165, 7
        %s168 = smul.addr %s167, 2
        %s169 = scalar_lea.vmem %s2, %s168
        %s170 = smul.u32 4, %s17
        %s171 = smul.u32 4, %s17
        %v173 = vld [vmem:[%s169] sm:$0x3]
        %v174 = vld [vmem:[%s169 + $0x2] sm:$0x3]
        %v175 = vld [vmem:[%s169 + $0x4] sm:$0x3]
        %v176 = vld [vmem:[%s169 + $0x6] sm:$0x3]
        %v177 = vunpack.c.l.s8.bf16 %v173
        %v178 = vunpack.c.l.s8.bf16 %v174
        %v179 = vunpack.c.l.s8.bf16 %v175
        %v180 = vunpack.c.l.s8.bf16 %v176
        %v181 = vld [vmem:[%s0] sm:$0xf]
        %v186 = vunpack.c.l.b16 %v177
        %v187 = vunpack.c.l.b16 %v178
        %v188 = vunpack.c.l.b16 %v179
        %v189 = vunpack.c.l.b16 %v180
        %v190 = vpack.c.b16 %v187, %v186
        %v191 = vpack.c.b16 %v189, %v188
        %vm192 = vcmask 64512
        %v194 = vsel %vm192, %v190, 0
        %v197 = vsel %vm192, %v191, 0
        %vm199 = vcmask 1043456
        %v201 = vsel %vm199, %v181, 0
        %203 = vmatprep.subr.bf16.mxu0 0
        %204 = vmatpush1.bf16.msra.mxu0 %v201
        %205 = vmatprep.subr.bf16.mxu0 0
        %206 = vmatpush1.bf16.msra.mxu0 0
        %207 = vmatprep.subr.bf16.mxu0 0
        %208 = vmatpush1.bf16.msra.mxu0 0
        %209 = vmatprep.subr.bf16.mxu0 0
        %210 = vmatpush1.bf16.msra.mxu0 0
        %211 = vmatprep.subr.bf16.mxu0 0
        %212 = vmatpush1.bf16.msra.mxu0 0
        %213 = vmatprep.subr.bf16.mxu0 0
        %214 = vmatpush1.bf16.msra.mxu0 0
        %215 = vmatprep.subr.bf16.mxu0 0
        %216 = vmatpush1.bf16.msra.mxu0 0
        %217 = vmatprep.subr.bf16.mxu0 0
        %218 = vmatpush1.bf16.msra.mxu0 0
        %219 = vmatprep.subr.bf16.mxu0 0
        %220 = vmatpush1.bf16.msra.mxu0 0
        %221 = vmatprep.subr.bf16.mxu0 0
        %222 = vmatpush1.bf16.msra.mxu0 0
        %223 = vmatprep.subr.bf16.mxu0 0
        %224 = vmatpush1.bf16.msra.mxu0 0
        %225 = vmatprep.subr.bf16.mxu0 0
        %226 = vmatpush1.bf16.msra.mxu0 0
        %227 = vmatprep.subr.bf16.mxu0 0
        %228 = vmatpush1.bf16.msra.mxu0 0
        %229 = vmatprep.subr.bf16.mxu0 0
        %230 = vmatpush1.bf16.msra.mxu0 0
        %231 = vmatprep.subr.bf16.mxu0 0
        %232 = vmatpush1.bf16.msra.mxu0 0
        %233 = vmatprep.subr.bf16.mxu0 0
        %234 = vmatpush1.bf16.msra.mxu0 0
        %235 = vmatprep.mubr.bf16.mxu0 0
        %236 = vmatmul.mubr.bf16.gmra.mrb[0].mxu0 %v194
        %v237 = vpop.f32.mrb[0].mxu0
        %v238 = vadd.f32 0.0, %v237
        %v239 = vpop.f32.mrb[0].mxu0
        %v240 = vpop.f32.mrb[0].mxu0
        %v241 = vadd.f32 0.0, %v240
        %v242 = vpop.f32.mrb[0].mxu0
        %243 = vmatprep.mubr.bf16.mxu0 0
        %244 = vmatmul.mubr.bf16.gmra.mrb[0].mxu0 %v197
        %v245 = vpop.f32.mrb[0].mxu0
        %v246 = vadd.f32 0.0, %v245
        %v247 = vpop.f32.mrb[0].mxu0
        %v248 = vpop.f32.mrb[0].mxu0
        %v249 = vadd.f32 0.0, %v248
        %v250 = vpop.f32.mrb[0].mxu0
        %251 = vdwg.mxu0
        %v252 = vld [vmem:[%s1] sm:$0x1]
        %v254 = vlaneseq
        %v255 = vshrl.u32 %v254, 7
        %v256 = vsub.s32 0, %v255
        %v257 = vrot.slane %v252, %v256
        %vm259 = vcmp.eq.f32.partialorder %v238, %v257
        %vm260 = vcmp.eq.f32.partialorder %v241, %v257
        %vm261 = vcmp.eq.f32.partialorder %v246, %v257
        %vm262 = vcmp.eq.f32.partialorder %v249, %v257
        %v263 = vsel %vm259, 1, 0
        %v264 = vsel %vm260, 1, 0
        %v265 = vsel %vm261, 1, 0
        %v266 = vsel %vm262, 1, 0
        %v267 = vcvt.s32.f32 %v263
        %v268 = vcvt.s32.f32 %v264
        %v269 = vcvt.s32.f32 %v265
        %v270 = vcvt.s32.f32 %v266
        %271 = vst [vmem:[%s164] sm:$0xff] %v267
        %272 = vst [vmem:[%s164 + $0x8] sm:$0xff] %v268
        %273 = vst [vmem:[%s164 + $0x10] sm:$0xff] %v269
        %274 = vst [vmem:[%s164 + $0x18] sm:$0xff] %v270
        %s275 = sand.u32 %s93, 1
        %s276 = scalar_lea.sflag [#allocation3], %s275
        %s277 = sand.u32 %s93, 1
        %s278 = smul.addr %s277, 32
        %s279 = scalar_lea.vmem [#allocation2], %s278
        // Predicated region
        $region33: #{tpu_custom_call.1} parent=31 // pred_check
          %p280 = pneg %p103
        $region34: #{tpu_custom_call.1} parent=31 // pred_check_branch
          %282 = sbr.rel (%p280) target = $region36
        $region35: #{tpu_custom_call.1} parent=31 // pred_region
          %s283 = smul.u32 4, %s17
          %s285 = ssub.s32 512, 512
          %286 = vsyncadd %s276, %s285
          %s287 = smul.addr %s283, 128
          %s288 = scalar_lea.hbm %s3, %s287
          %s289 = sshll.u32 %s279, 4
          %s290 = int_to_ptr.vmem [resolvable:$true] %s289
          %295 = dma.vmem_to_hbm [thread:$0]  %s290, 512, %s288, %s276, 128, 128, 8
        $region36: #{tpu_custom_call.1} parent=31 // pred_fallthru
          _
      $region32: #{tpu_custom_call.1} parent=5 // pred_fallthru
        _
      %p296 = scmp.le.s32.totalorder 2, %s12
      // Predicated region
      $region37: #{tpu_custom_call.1} parent=5 // pred_check
        %p297 = pneg %p296
      $region38: #{tpu_custom_call.1} parent=5 // pred_check_branch
        %299 = sbr.rel (%p297) target = $region40
      $region39: #{tpu_custom_call.1} parent=5 // pred_region
        %s300 = ssub.s32 %s12, 2
        // Predicated region
        $region41: #{tpu_custom_call.1} parent=39 // pred_check
          %p301 = pneg %p109
        $region42: #{tpu_custom_call.1} parent=39 // pred_check_branch
          %303 = sbr.rel (%p301) target = $region44
        $region43: #{tpu_custom_call.1} parent=39 // pred_region
          %s304 = sand.u32 %s94, 1
          %s305 = scalar_lea.sflag [#allocation3], %s304
          %s306 = sand.u32 %s94, 1
          %s307 = smul.addr %s306, 32
          %s308 = scalar_lea.vmem [#allocation2], %s307
          %309 = dma.done %s305, 512
        $region44: #{tpu_custom_call.1} parent=39 // pred_fallthru
          _
      $region40: #{tpu_custom_call.1} parent=5 // pred_fallthru
        _
    $region6: #{tpu_custom_call.1} parent=1 // loop_footer
      %s16 = sadd.s32 1, %s12
    $region7: #{tpu_custom_call.1} parent=1 // loop_footer_branch
      %11 = sbr.rel target = $region3
    $region8: #{tpu_custom_call.1} parent=1 // loop_exit
      _
    %310 = vsyncpa [#allocation3], 1
    %s311 = scalar_lea.sflag [#allocation3], 1
    %312 = vsyncpa %s311, 1

</llo_original>
